<compile_context>
chip_gen: v7x
topology: tpu7x:2x2x1
jax: 0.10.0
libtpu: 0.0.40
codegen_flags: <defaults>
</compile_context>

<pallas_src>
import jax
import jax.numpy as jnp
from jax.experimental import pallas as pl
from jax.experimental.pallas import tpu as pltpu

BN_EPS = 1e-5
OUT_PAD = 128   # lane-dense output width
IN_PAD = 128    # input-feature pad (full MXU depth / lane-dense x tiles)


def _round_up(n, m):
    return ((n + m - 1) // m) * m


def mlp_kernel(x_ref, w1, b1, w2, b2, w3, b3, w4, b4, out_ref):
    """Fused 4-layer MLP (BN already folded into W/b).  One batch tile per step."""
    h = x_ref[...].astype(jnp.bfloat16)                       # [TB, in_pad] bf16
    h = jnp.dot(h, w1[...], preferred_element_type=jnp.float32) + b1[...]
    h = jnp.maximum(h, 0.0).astype(jnp.bfloat16)               # bf16 between layers
    h = jnp.dot(h, w2[...], preferred_element_type=jnp.float32) + b2[...]
    h = jnp.maximum(h, 0.0).astype(jnp.bfloat16)
    h = jnp.dot(h, w3[...], preferred_element_type=jnp.float32) + b3[...]
    h = jnp.maximum(h, 0.0).astype(jnp.bfloat16)
    out = jnp.dot(h, w4[...], preferred_element_type=jnp.float32) + b4[...]
    out_ref[...] = out.astype(out_ref.dtype)                   # bf16 lane-dense store


def fold_bn_params(raw_params, out_pad=OUT_PAD, in_pad=IN_PAD):
    """Fold eval-mode BN into the adjacent Linear layers (prep-time, not hot path).

    raw_params: (W, b, gamma, beta, mean, var) x 3 hidden layers + (W, b) final.
    Returns (W1,b1, W2,b2, W3,b3, W4,b4): W bf16 [in,out], b f32 [1,out].
      - W1 rows zero-padded to a multiple of `in_pad` (x columns padded to match).
      - Final layer zero-padded to `out_pad` output lanes (lane-dense store).
    """
    ws = [jnp.asarray(raw_params[6 * i], jnp.float32) for i in range(3)]
    ws.append(jnp.asarray(raw_params[18], jnp.float32))
    bs = [jnp.asarray(raw_params[6 * i + 1], jnp.float32).reshape(1, -1) for i in range(3)]
    bs.append(jnp.asarray(raw_params[19], jnp.float32).reshape(1, -1))

    # BN i sits between layer i and layer i+1 (ReLU-before-BN ordering preserved):
    # fold shift into next bias with the UNSCALED W_next, then scale W_next rows.
    for i in range(3):
        g, be, m, v = (jnp.asarray(p, jnp.float32).reshape(1, -1)
                       for p in raw_params[6 * i + 2: 6 * i + 6])
        s = g * jax.lax.rsqrt(v + BN_EPS)         # [1, h]
        t = be - m * s                            # [1, h]
        bs[i + 1] = bs[i + 1] + t @ ws[i + 1]     # shift folded into next bias
        ws[i + 1] = ws[i + 1] * s.reshape(-1, 1)  # diag(s) @ W_next

    # Input-feature padding: zero rows of W1 match zero-padded x columns.
    d_in, h0 = ws[0].shape
    d_in_pad = _round_up(d_in, in_pad)
    if d_in_pad != d_in:
        ws[0] = jnp.zeros((d_in_pad, h0), jnp.float32).at[:d_in].set(ws[0])

    # Lane-dense final layer: pad [h, out] -> [h, out_pad].
    h_last, osz = ws[3].shape
    ws[3] = jnp.zeros((h_last, out_pad), jnp.float32).at[:, :osz].set(ws[3])
    bs[3] = jnp.zeros((1, out_pad), jnp.float32).at[:, :osz].set(bs[3])

    folded = []
    for w, b in zip(ws, bs):
        folded += [w.astype(jnp.bfloat16), b]  # bf16 weights, f32 biases
    return tuple(folded)


def enhanced_dnn_forward(x, folded_params, output_size=2, block_b=1024):
    """x: [B, input_size] f32.  folded_params: output of fold_bn_params."""
    B, d_in = x.shape
    w1, b1, w2, b2, w3, b3, w4, b4 = folded_params
    d_in_pad = w1.shape[0]
    out_pad = w4.shape[-1]

    # Batch tile:
    #   - large (amortizes ~0.35us/step overhead, fills MXU rows) for big B,
    #   - but capped at ceil(B/2) so the grid has >= 2 steps and the batch
    #     axis can be sharded across v7x's two TensorCores,
    #   - minimal (multiple of 8) for tiny B.
    if B > 8:
        tb = min(block_b, _round_up(pl.cdiv(B, 2), 8))
    else:
        tb = _round_up(B, 8)
    b_pad = _round_up(B, tb)

    pad_rows = b_pad - B
    pad_cols = d_in_pad - d_in
    if pad_rows or pad_cols:
        x = jnp.pad(x, ((0, pad_rows), (0, pad_cols)))
    grid = (b_pad // tb,)

    def resident(arr):
        # Constant block index -> stays VMEM-resident across grid steps;
        # Buffered(1) skips the pointless double-buffer copy.
        return pl.BlockSpec(arr.shape, lambda i: (0, 0),
                            pipeline_mode=pl.Buffered(1))

    in_specs = [
        pl.BlockSpec((tb, d_in_pad), lambda i: (i, 0)),
        resident(w1), resident(b1),
        resident(w2), resident(b2),
        resident(w3), resident(b3),
        resident(w4), resident(b4),
    ]
    out_specs = pl.BlockSpec((tb, out_pad), lambda i: (i, 0))

    flops = 2 * b_pad * sum(w.shape[0] * w.shape[1] for w in (w1, w2, w3, w4))
    bytes_accessed = (sum(int(p.size) * p.dtype.itemsize for p in folded_params)
                      + int(x.size) * 4 + b_pad * out_pad * 2)
    cost = pl.CostEstimate(flops=flops, transcendentals=0,
                           bytes_accessed=bytes_accessed)

    out = pl.pallas_call(
        mlp_kernel,
        out_shape=jax.ShapeDtypeStruct((b_pad, out_pad), jnp.bfloat16),
        grid=grid,
        in_specs=in_specs,
        out_specs=out_specs,
        compiler_params=pltpu.CompilerParams(
            dimension_semantics=("parallel",),
            vmem_limit_bytes=32 * 1024 * 1024,
        ),
        cost_estimate=cost,
    )(x, w1, b1, w2, b2, w3, b3, w4, b4)

    # Padded rows / lanes carry bias-driven garbage; slice before use.
    return out[:B, :output_size].astype(jnp.float32)


def init_params(key, input_size, hidden_sizes, output_size):
    """Raw (unfolded) params mirroring PyTorch layout.

    Linear: U(-1/sqrt(fan_in), 1/sqrt(fan_in)); W stored as [in, out].
    BatchNorm1d running stats are given non-trivial values so the BN-folding
    path is actually exercised by the correctness check.
    """
    params = []
    in_size = input_size
    for h in hidden_sizes:
        key, kw, kb, kg, kbe, km, kv = jax.random.split(key, 7)
        bound = 1.0 / jnp.sqrt(in_size)
        w = jax.random.uniform(kw, (in_size, h), jnp.float32, -bound, bound)
        b = jax.random.uniform(kb, (1, h), jnp.float32, -bound, bound)
        gamma = jax.random.uniform(kg, (1, h), jnp.float32, 0.5, 1.5)
        beta = 0.1 * jax.random.normal(kbe, (1, h), jnp.float32)
        rmean = 0.1 * jax.random.normal(km, (1, h), jnp.float32)
        rvar = jax.random.uniform(kv, (1, h), jnp.float32, 0.5, 1.5)
        params += [w, b, gamma, beta, rmean, rvar]
        in_size = h
    key, kw, kb = jax.random.split(key, 3)
    bound = 1.0 / jnp.sqrt(in_size)
    w = jax.random.uniform(kw, (in_size, output_size), jnp.float32, -bound, bound)
    b = jax.random.uniform(kb, (1, output_size), jnp.float32, -bound, bound)
    params += [w, b]
    return tuple(params)


def reference_forward(x, raw_params):
    """Pure-JAX f32 reference of the original (unfolded) module, eval mode."""
    h = x
    for i in range(3):
        w, b, g, be, m, v = raw_params[6 * i: 6 * i + 6]
        h = jnp.maximum(h @ w + b, 0.0)
        h = (h - m) * jax.lax.rsqrt(v + BN_EPS) * g + be
    w, b = raw_params[-2], raw_params[-1]
    return h @ w + b


if __name__ == "__main__":
    input_size = 32
    hidden_sizes = [512, 256, 128]
    output_size = 2
    batch = 8

    key = jax.random.PRNGKey(0)
    key, kx = jax.random.split(key)
    x = jax.random.normal(kx, (batch, input_size), jnp.float32)
    raw_params = init_params(key, input_size, hidden_sizes, output_size)
    folded_params = fold_bn_params(raw_params)   # prep once, out of hot path

    out = enhanced_dnn_forward(x, folded_params, output_size=output_size)
    out = jax.block_until_ready(out)

    ref = reference_forward(x, raw_params)
    assert out.shape == (batch, output_size)
    max_err = float(jnp.max(jnp.abs(out - ref)))
    # bf16 weights/activations/output vs f32 reference: loose tolerance is expected.
    assert jnp.allclose(out, ref, atol=5e-2, rtol=5e-2), \
        f"mismatch vs reference (max abs err {max_err})"
    print("KERNEL_OK")
</pallas_src>

<mosaic_0001>
module attributes {stable_mosaic.version = 11 : i64} {
  func.func @mlp_kernel(%arg0: i32, %arg1: memref<8x128xf32, #tpu.memory_space<vmem>>, %arg2: memref<128x512xbf16, #tpu.memory_space<vmem>>, %arg3: memref<1x512xf32, #tpu.memory_space<vmem>>, %arg4: memref<512x256xbf16, #tpu.memory_space<vmem>>, %arg5: memref<1x256xf32, #tpu.memory_space<vmem>>, %arg6: memref<256x128xbf16, #tpu.memory_space<vmem>>, %arg7: memref<1x128xf32, #tpu.memory_space<vmem>>, %arg8: memref<128x128xbf16, #tpu.memory_space<vmem>>, %arg9: memref<1x128xf32, #tpu.memory_space<vmem>>, %arg10: memref<8x128xbf16, #tpu.memory_space<vmem>>) attributes {dimension_semantics = [#tpu.dimension_semantics<parallel>], iteration_bounds = array<i64: 1>, scalar_prefetch = 0 : i64, scratch_operands = 0 : i64, tpu.core_type = #tpu.core_type<tc>, window_params = [{transform_indices = @transform_0, window_bounds = array<i64: 8, 128>}, {pipeline_mode = #tpu.pipeline_mode<synchronous>, transform_indices = @transform_1, window_bounds = array<i64: 128, 512>}, {pipeline_mode = #tpu.pipeline_mode<synchronous>, transform_indices = @transform_2, window_bounds = array<i64: 1, 512>}, {pipeline_mode = #tpu.pipeline_mode<synchronous>, transform_indices = @transform_3, window_bounds = array<i64: 512, 256>}, {pipeline_mode = #tpu.pipeline_mode<synchronous>, transform_indices = @transform_4, window_bounds = array<i64: 1, 256>}, {pipeline_mode = #tpu.pipeline_mode<synchronous>, transform_indices = @transform_5, window_bounds = array<i64: 256, 128>}, {pipeline_mode = #tpu.pipeline_mode<synchronous>, transform_indices = @transform_6, window_bounds = array<i64: 1, 128>}, {pipeline_mode = #tpu.pipeline_mode<synchronous>, transform_indices = @transform_7, window_bounds = array<i64: 128, 128>}, {pipeline_mode = #tpu.pipeline_mode<synchronous>, transform_indices = @transform_8, window_bounds = array<i64: 1, 128>}, {transform_indices = @transform_9, window_bounds = array<i64: 8, 128>}]} {
    %c0 = arith.constant 0 : index
    %c0_0 = arith.constant 0 : index
    %0 = vector.load %arg1[%c0, %c0_0] : memref<8x128xf32, #tpu.memory_space<vmem>>, vector<8x128xf32>
    %1 = arith.truncf %0 : vector<8x128xf32> to vector<8x128xbf16>
    %c0_1 = arith.constant 0 : index
    %c0_2 = arith.constant 0 : index
    %2 = vector.load %arg2[%c0_1, %c0_2] : memref<128x512xbf16, #tpu.memory_space<vmem>>, vector<128x512xbf16>
    %cst = arith.constant dense<0.000000e+00> : vector<8x512xf32>
    %3 = tpu.matmul %1, %2, %cst {dimension_numbers = #tpu.dot_dimension_numbers<[1], [0], [0], [1], [0, 0, 1, 1], [], []>} : vector<8x128xbf16>, vector<128x512xbf16>, vector<8x512xf32> -> vector<8x512xf32>
    %c0_3 = arith.constant 0 : index
    %c0_4 = arith.constant 0 : index
    %4 = vector.load %arg3[%c0_3, %c0_4] : memref<1x512xf32, #tpu.memory_space<vmem>>, vector<1x512xf32>
    %5 = vector.broadcast %4 : vector<1x512xf32> to vector<8x512xf32>
    %6 = arith.addf %3, %5 : vector<8x512xf32>
    %cst_5 = arith.constant 0.000000e+00 : f32
    %7 = vector.broadcast %cst_5 : f32 to vector<8x512xf32>
    %8 = arith.maximumf %6, %7 : vector<8x512xf32>
    %9 = arith.truncf %8 : vector<8x512xf32> to vector<8x512xbf16>
    %c0_6 = arith.constant 0 : index
    %c0_7 = arith.constant 0 : index
    %10 = vector.load %arg4[%c0_6, %c0_7] : memref<512x256xbf16, #tpu.memory_space<vmem>>, vector<512x256xbf16>
    %cst_8 = arith.constant dense<0.000000e+00> : vector<8x256xf32>
    %11 = tpu.matmul %9, %10, %cst_8 {dimension_numbers = #tpu.dot_dimension_numbers<[1], [0], [0], [1], [0, 0, 1, 1], [], []>} : vector<8x512xbf16>, vector<512x256xbf16>, vector<8x256xf32> -> vector<8x256xf32>
    %c0_9 = arith.constant 0 : index
    %c0_10 = arith.constant 0 : index
    %12 = vector.load %arg5[%c0_9, %c0_10] : memref<1x256xf32, #tpu.memory_space<vmem>>, vector<1x256xf32>
    %13 = vector.broadcast %12 : vector<1x256xf32> to vector<8x256xf32>
    %14 = arith.addf %11, %13 : vector<8x256xf32>
    %cst_11 = arith.constant 0.000000e+00 : f32
    %15 = vector.broadcast %cst_11 : f32 to vector<8x256xf32>
    %16 = arith.maximumf %14, %15 : vector<8x256xf32>
    %17 = arith.truncf %16 : vector<8x256xf32> to vector<8x256xbf16>
    %c0_12 = arith.constant 0 : index
    %c0_13 = arith.constant 0 : index
    %18 = vector.load %arg6[%c0_12, %c0_13] : memref<256x128xbf16, #tpu.memory_space<vmem>>, vector<256x128xbf16>
    %cst_14 = arith.constant dense<0.000000e+00> : vector<8x128xf32>
    %19 = tpu.matmul %17, %18, %cst_14 {dimension_numbers = #tpu.dot_dimension_numbers<[1], [0], [0], [1], [0, 0, 1, 1], [], []>} : vector<8x256xbf16>, vector<256x128xbf16>, vector<8x128xf32> -> vector<8x128xf32>
    %c0_15 = arith.constant 0 : index
    %c0_16 = arith.constant 0 : index
    %20 = vector.load %arg7[%c0_15, %c0_16] : memref<1x128xf32, #tpu.memory_space<vmem>>, vector<1x128xf32>
    %21 = vector.broadcast %20 : vector<1x128xf32> to vector<8x128xf32>
    %22 = arith.addf %19, %21 : vector<8x128xf32>
    %cst_17 = arith.constant 0.000000e+00 : f32
    %23 = vector.broadcast %cst_17 : f32 to vector<8x128xf32>
    %24 = arith.maximumf %22, %23 : vector<8x128xf32>
    %25 = arith.truncf %24 : vector<8x128xf32> to vector<8x128xbf16>
    %c0_18 = arith.constant 0 : index
    %c0_19 = arith.constant 0 : index
    %26 = vector.load %arg8[%c0_18, %c0_19] : memref<128x128xbf16, #tpu.memory_space<vmem>>, vector<128x128xbf16>
    %cst_20 = arith.constant dense<0.000000e+00> : vector<8x128xf32>
    %27 = tpu.matmul %25, %26, %cst_20 {dimension_numbers = #tpu.dot_dimension_numbers<[1], [0], [0], [1], [0, 0, 1, 1], [], []>} : vector<8x128xbf16>, vector<128x128xbf16>, vector<8x128xf32> -> vector<8x128xf32>
    %c0_21 = arith.constant 0 : index
    %c0_22 = arith.constant 0 : index
    %28 = vector.load %arg9[%c0_21, %c0_22] : memref<1x128xf32, #tpu.memory_space<vmem>>, vector<1x128xf32>
    %29 = vector.broadcast %28 : vector<1x128xf32> to vector<8x128xf32>
    %30 = arith.addf %27, %29 : vector<8x128xf32>
    %31 = arith.truncf %30 : vector<8x128xf32> to vector<8x128xbf16>
    %c0_23 = arith.constant 0 : index
    %c0_24 = arith.constant 0 : index
    %32 = vector.load %arg10[%c0_23, %c0_24] : memref<8x128xbf16, #tpu.memory_space<vmem>>, vector<8x128xbf16>
    tpu.vector_store %arg10[%c0_23, %c0_24], %31 {strides = array<i32>} : memref<8x128xbf16, #tpu.memory_space<vmem>>, vector<8x128xbf16>,
    return
  }
  func.func @transform_0(%arg0: i32) -> (i32, i32) {
    %c0_i32 = arith.constant 0 : i32
    %c0_i32_0 = arith.constant 0 : i32
    return %arg0, %c0_i32 : i32, i32
  }
  func.func @transform_1(%arg0: i32) -> (i32, i32) {
    %c0_i32 = arith.constant 0 : i32
    %c0_i32_0 = arith.constant 0 : i32
    %c0_i32_1 = arith.constant 0 : i32
    return %c0_i32, %c0_i32_0 : i32, i32
  }
  func.func @transform_2(%arg0: i32) -> (i32, i32) {
    %c0_i32 = arith.constant 0 : i32
    %c0_i32_0 = arith.constant 0 : i32
    %c0_i32_1 = arith.constant 0 : i32
    return %c0_i32, %c0_i32_0 : i32, i32
  }
  func.func @transform_3(%arg0: i32) -> (i32, i32) {
    %c0_i32 = arith.constant 0 : i32
    %c0_i32_0 = arith.constant 0 : i32
    %c0_i32_1 = arith.constant 0 : i32
    return %c0_i32, %c0_i32_0 : i32, i32
  }
  func.func @transform_4(%arg0: i32) -> (i32, i32) {
    %c0_i32 = arith.constant 0 : i32
    %c0_i32_0 = arith.constant 0 : i32
    %c0_i32_1 = arith.constant 0 : i32
    return %c0_i32, %c0_i32_0 : i32, i32
  }
  func.func @transform_5(%arg0: i32) -> (i32, i32) {
    %c0_i32 = arith.constant 0 : i32
    %c0_i32_0 = arith.constant 0 : i32
    %c0_i32_1 = arith.constant 0 : i32
    return %c0_i32, %c0_i32_0 : i32, i32
  }
  func.func @transform_6(%arg0: i32) -> (i32, i32) {
    %c0_i32 = arith.constant 0 : i32
    %c0_i32_0 = arith.constant 0 : i32
    %c0_i32_1 = arith.constant 0 : i32
    return %c0_i32, %c0_i32_0 : i32, i32
  }
  func.func @transform_7(%arg0: i32) -> (i32, i32) {
    %c0_i32 = arith.constant 0 : i32
    %c0_i32_0 = arith.constant 0 : i32
    %c0_i32_1 = arith.constant 0 : i32
    return %c0_i32, %c0_i32_0 : i32, i32
  }
  func.func @transform_8(%arg0: i32) -> (i32, i32) {
    %c0_i32 = arith.constant 0 : i32
    %c0_i32_0 = arith.constant 0 : i32
    %c0_i32_1 = arith.constant 0 : i32
    return %c0_i32, %c0_i32_0 : i32, i32
  }
  func.func @transform_9(%arg0: i32) -> (i32, i32) {
    %c0_i32 = arith.constant 0 : i32
    %c0_i32_0 = arith.constant 0 : i32
    return %arg0, %c0_i32 : i32, i32
  }
}

</mosaic_0001>

<llo_original>
// kernel: tpu_custom_call.1
$region0: #{tpu_custom_call.1}
  #allocation0 [shape = 'u32[]', space=smem, size = 0x4, offset = 0x4, fixed_abs, tag = 'smem constant byte address 0x4 - core index']
  #allocation1 [shape = 'u32[144,128]{1,0:T(1,128)}', space=vmem, size = 0x12000, scoped, tag = 'internal scratch']
  %s0 = inlined_call_operand.hbm [shape: f32[8,128], index: 0, kind: input, shape index: {}]
  %s1 = inlined_call_operand.hbm [shape: bf16[128,512], index: 1, kind: input, shape index: {}]
  %s2 = inlined_call_operand.vmem [shape: f32[1,512], index: 2, kind: input, shape index: {}]
  %s3 = inlined_call_operand.hbm [shape: bf16[512,256], index: 3, kind: input, shape index: {}]
  %s4 = inlined_call_operand.vmem [shape: f32[1,256], index: 4, kind: input, shape index: {}]
  %s5 = inlined_call_operand.hbm [shape: bf16[256,128], index: 5, kind: input, shape index: {}]
  %s6 = inlined_call_operand.vmem [shape: f32[1,128], index: 6, kind: input, shape index: {}]
  %s7 = inlined_call_operand.hbm [shape: bf16[128,128], index: 7, kind: input, shape index: {}]
  %s8 = inlined_call_operand.vmem [shape: f32[1,128], index: 8, kind: input, shape index: {}]
  %s9 = inlined_call_operand.hbm [shape: bf16[8,128], index: 9, kind: output, shape index: {}]
  %s10 = sld [smem:[#allocation0]]
  $region66: #{tpu_custom_call.1} parent=0
    _
  %s12 = ssub.s32 1, %s10
  %s13 = scalar_select 0, %s12, %s10
  $region1: #{tpu_custom_call.1} parent=0
    #allocation2 [shape = 'u8[4096]{0}', space=vmem, size = 0x1000, scoped, tag = 'input window, operand 0, single buffered']
    #allocation3 [shape = 's32[1]{0}', space=sflag, size = 0x4, scoped, tag = 'scoped memory for tpu_custom_call.1']
    #allocation4 [shape = 's32[1]{0}', space=sflag, size = 0x4, scoped, tag = 'scoped memory for tpu_custom_call.1']
    #allocation5 [shape = 'u8[131072]{0}', space=vmem, size = 0x20000, scoped, tag = 'input window, operand 1, single buffered']
    #allocation6 [shape = 's32[1]{0}', space=sflag, size = 0x4, scoped, tag = 'scoped memory for tpu_custom_call.1']
    #allocation7 [shape = 'u8[262144]{0}', space=vmem, size = 0x40000, scoped, tag = 'input window, operand 3, single buffered']
    #allocation8 [shape = 'u8[65536]{0}', space=vmem, size = 0x10000, scoped, tag = 'input window, operand 5, single buffered']
    #allocation9 [shape = 's32[1]{0}', space=sflag, size = 0x4, scoped, tag = 'scoped memory for tpu_custom_call.1']
    #allocation10 [shape = 'u8[32768]{0}', space=vmem, size = 0x8000, scoped, tag = 'input window, operand 7, single buffered']
    #allocation11 [shape = 'u8[2048]{0}', space=vmem, size = 0x800, scoped, tag = 'output window, operand 0, single buffered']
    %14 = vsyncpa [#allocation3], 0
    %15 = vsyncpa [#allocation6], 0
    %16 = vsyncpa [#allocation9], 0
    %17 = vsyncpa [#allocation4], 0
    // Predicated region
    $region2: #{tpu_custom_call.1} parent=1 // pred_check
      _
    $region3: #{tpu_custom_call.1} parent=1 // pred_check_branch
      %19 = sbr.rel (0) target = $region5
    $region4: #{tpu_custom_call.1} parent=1 // pred_region
      %s21 = ssub.s32 128, 128
      %22 = vsyncadd [#allocation3], %s21
      %s24 = sshll.u32 [#allocation2], 4
      %s25 = int_to_ptr.vmem [resolvable:$true] %s24
      %27 = dma.hbm_to_vmem [thread:$0]  %s0, 128, %s25, [#allocation3]
    $region5: #{tpu_custom_call.1} parent=1 // pred_fallthru
      _
    // Predicated region
    $region6: #{tpu_custom_call.1} parent=1 // pred_check
      _
    $region7: #{tpu_custom_call.1} parent=1 // pred_check_branch
      %29 = sbr.rel (0) target = $region9
    $region8: #{tpu_custom_call.1} parent=1 // pred_region
      %s31 = ssub.s32 4096, 4096
      %32 = vsyncadd [#allocation6], %s31
      %s33 = sshll.u32 [#allocation5], 4
      %s34 = int_to_ptr.vmem [resolvable:$true] %s33
      %39 = dma.hbm_to_vmem [thread:$0]  %s1, 4096, %s34, [#allocation6], 256, 256, 16
    $region9: #{tpu_custom_call.1} parent=1 // pred_fallthru
      _
    // Predicated region
    $region10: #{tpu_custom_call.1} parent=1 // pred_check
      _
    $region11: #{tpu_custom_call.1} parent=1 // pred_check_branch
      %41 = sbr.rel (0) target = $region13
    $region12: #{tpu_custom_call.1} parent=1 // pred_region
      _
    $region13: #{tpu_custom_call.1} parent=1 // pred_fallthru
      _
    // Predicated region
    $region14: #{tpu_custom_call.1} parent=1 // pred_check
      _
    $region15: #{tpu_custom_call.1} parent=1 // pred_check_branch
      %43 = sbr.rel (0) target = $region17
    $region16: #{tpu_custom_call.1} parent=1 // pred_region
      %s45 = ssub.s32 8192, 8192
      %46 = vsyncadd [#allocation6], %s45
      %s47 = sshll.u32 [#allocation7], 4
      %s48 = int_to_ptr.vmem [resolvable:$true] %s47
      %53 = dma.hbm_to_vmem [thread:$0]  %s3, 8192, %s48, [#allocation6], 128, 128, 8
    $region17: #{tpu_custom_call.1} parent=1 // pred_fallthru
      _
    // Predicated region
    $region18: #{tpu_custom_call.1} parent=1 // pred_check
      _
    $region19: #{tpu_custom_call.1} parent=1 // pred_check_branch
      %55 = sbr.rel (0) target = $region21
    $region20: #{tpu_custom_call.1} parent=1 // pred_region
      _
    $region21: #{tpu_custom_call.1} parent=1 // pred_fallthru
      _
    // Predicated region
    $region22: #{tpu_custom_call.1} parent=1 // pred_check
      _
    $region23: #{tpu_custom_call.1} parent=1 // pred_check_branch
      %57 = sbr.rel (0) target = $region25
    $region24: #{tpu_custom_call.1} parent=1 // pred_region
      %s59 = ssub.s32 2048, 2048
      %60 = vsyncadd [#allocation9], %s59
      %s61 = sshll.u32 [#allocation8], 4
      %s62 = int_to_ptr.vmem [resolvable:$true] %s61
      %67 = dma.hbm_to_vmem [thread:$0]  %s5, 2048, %s62, [#allocation9], 64, 64, 4
    $region25: #{tpu_custom_call.1} parent=1 // pred_fallthru
      _
    // Predicated region
    $region26: #{tpu_custom_call.1} parent=1 // pred_check
      _
    $region27: #{tpu_custom_call.1} parent=1 // pred_check_branch
      %69 = sbr.rel (0) target = $region29
    $region28: #{tpu_custom_call.1} parent=1 // pred_region
      _
    $region29: #{tpu_custom_call.1} parent=1 // pred_fallthru
      _
    // Predicated region
    $region30: #{tpu_custom_call.1} parent=1 // pred_check
      _
    $region31: #{tpu_custom_call.1} parent=1 // pred_check_branch
      %71 = sbr.rel (0) target = $region33
    $region32: #{tpu_custom_call.1} parent=1 // pred_region
      %s73 = ssub.s32 1024, 1024
      %74 = vsyncadd [#allocation9], %s73
      %s75 = sshll.u32 [#allocation10], 4
      %s76 = int_to_ptr.vmem [resolvable:$true] %s75
      %81 = dma.hbm_to_vmem [thread:$0]  %s7, 1024, %s76, [#allocation9], 64, 64, 4
    $region33: #{tpu_custom_call.1} parent=1 // pred_fallthru
      _
    // Predicated region
    $region34: #{tpu_custom_call.1} parent=1 // pred_check
      _
    $region35: #{tpu_custom_call.1} parent=1 // pred_check_branch
      %83 = sbr.rel (0) target = $region37
    $region36: #{tpu_custom_call.1} parent=1 // pred_region
      _
    $region37: #{tpu_custom_call.1} parent=1 // pred_fallthru
      _
    // Predicated region
    $region38: #{tpu_custom_call.1} parent=1 // pred_check
      _
    $region39: #{tpu_custom_call.1} parent=1 // pred_check_branch
      %85 = sbr.rel (0) target = $region41
    $region40: #{tpu_custom_call.1} parent=1 // pred_region
      %86 = dma.done [#allocation3], 128
    $region41: #{tpu_custom_call.1} parent=1 // pred_fallthru
      _
    // Predicated region
    $region42: #{tpu_custom_call.1} parent=1 // pred_check
      _
    $region43: #{tpu_custom_call.1} parent=1 // pred_check_branch
      %88 = sbr.rel (0) target = $region45
    $region44: #{tpu_custom_call.1} parent=1 // pred_region
      %89 = dma.done [#allocation6], 4096
    $region45: #{tpu_custom_call.1} parent=1 // pred_fallthru
      _
    // Predicated region
    $region46: #{tpu_custom_call.1} parent=1 // pred_check
      _
    $region47: #{tpu_custom_call.1} parent=1 // pred_check_branch
      %91 = sbr.rel (0) target = $region49
    $region48: #{tpu_custom_call.1} parent=1 // pred_region
      %92 = dma.done [#allocation6], 8192
    $region49: #{tpu_custom_call.1} parent=1 // pred_fallthru
      _
    // Predicated region
    $region50: #{tpu_custom_call.1} parent=1 // pred_check
      _
    $region51: #{tpu_custom_call.1} parent=1 // pred_check_branch
      %94 = sbr.rel (0) target = $region53
    $region52: #{tpu_custom_call.1} parent=1 // pred_region
      %95 = dma.done [#allocation9], 2048
    $region53: #{tpu_custom_call.1} parent=1 // pred_fallthru
      _
    // Predicated region
    $region54: #{tpu_custom_call.1} parent=1 // pred_check
      _
    $region55: #{tpu_custom_call.1} parent=1 // pred_check_branch
      %97 = sbr.rel (0) target = $region57
    $region56: #{tpu_custom_call.1} parent=1 // pred_region
      %98 = dma.done [#allocation9], 1024
    $region57: #{tpu_custom_call.1} parent=1 // pred_fallthru
      _
    %v100 = vld [vmem:[#allocation2] sm:$0xff]
    %v101 = vpack.c.bf16 %v100, %v100
    %v102 = vld [vmem:[#allocation5] sm:$0xff]
    %v103 = vld [vmem:[#allocation5 + $0x8] sm:$0xff]
    %v104 = vld [vmem:[#allocation5 + $0x10] sm:$0xff]
    %v105 = vld [vmem:[#allocation5 + $0x18] sm:$0xff]
    %v106 = vld [vmem:[#allocation5 + $0x20] sm:$0xff]
    %v107 = vld [vmem:[#allocation5 + $0x28] sm:$0xff]
    %v108 = vld [vmem:[#allocation5 + $0x30] sm:$0xff]
    %v109 = vld [vmem:[#allocation5 + $0x38] sm:$0xff]
    %v110 = vld [vmem:[#allocation5 + $0x40] sm:$0xff]
    %v111 = vld [vmem:[#allocation5 + $0x48] sm:$0xff]
    %v112 = vld [vmem:[#allocation5 + $0x50] sm:$0xff]
    %v113 = vld [vmem:[#allocation5 + $0x58] sm:$0xff]
    %v114 = vld [vmem:[#allocation5 + $0x60] sm:$0xff]
    %v115 = vld [vmem:[#allocation5 + $0x68] sm:$0xff]
    %v116 = vld [vmem:[#allocation5 + $0x70] sm:$0xff]
    %v117 = vld [vmem:[#allocation5 + $0x78] sm:$0xff]
    %v118 = vld [vmem:[#allocation5 + $0x80] sm:$0xff]
    %v119 = vld [vmem:[#allocation5 + $0x88] sm:$0xff]
    %v120 = vld [vmem:[#allocation5 + $0x90] sm:$0xff]
    %v121 = vld [vmem:[#allocation5 + $0x98] sm:$0xff]
    %v122 = vld [vmem:[#allocation5 + $0xa0] sm:$0xff]
    %v123 = vld [vmem:[#allocation5 + $0xa8] sm:$0xff]
    %v124 = vld [vmem:[#allocation5 + $0xb0] sm:$0xff]
    %v125 = vld [vmem:[#allocation5 + $0xb8] sm:$0xff]
    %v126 = vld [vmem:[#allocation5 + $0xc0] sm:$0xff]
    %v127 = vld [vmem:[#allocation5 + $0xc8] sm:$0xff]
    %v128 = vld [vmem:[#allocation5 + $0xd0] sm:$0xff]
    %v129 = vld [vmem:[#allocation5 + $0xd8] sm:$0xff]
    %v130 = vld [vmem:[#allocation5 + $0xe0] sm:$0xff]
    %v131 = vld [vmem:[#allocation5 + $0xe8] sm:$0xff]
    %v132 = vld [vmem:[#allocation5 + $0xf0] sm:$0xff]
    %v133 = vld [vmem:[#allocation5 + $0xf8] sm:$0xff]
    %v134 = vld [vmem:[%s2] sm:$0xf]
    %v136 = vlaneseq
    %v137 = vshrl.u32 %v136, 7
    %v138 = vsub.s32 0, %v137
    %v139 = vrot.slane %v134, %v138
    %v140 = vlaneseq
    %v141 = vshrl.u32 %v140, 7
    %v142 = vsub.s32 1, %v141
    %v143 = vrot.slane %v134, %v142
    %v144 = vlaneseq
    %v145 = vshrl.u32 %v144, 7
    %v146 = vsub.s32 2, %v145
    %v147 = vrot.slane %v134, %v146
    %v148 = vlaneseq
    %v149 = vshrl.u32 %v148, 7
    %v150 = vsub.s32 3, %v149
    %v151 = vrot.slane %v134, %v150
    %v188 = vunpack.c.l.b16 %v102
    %v189 = vunpack.c.h.b16 %v102
    %v190 = vunpack.c.l.b16 %v103
    %v191 = vunpack.c.h.b16 %v103
    %v192 = vunpack.c.l.b16 %v104
    %v193 = vunpack.c.h.b16 %v104
    %v194 = vunpack.c.l.b16 %v105
    %v195 = vunpack.c.h.b16 %v105
    %v196 = vunpack.c.l.b16 %v106
    %v197 = vunpack.c.h.b16 %v106
    %v198 = vunpack.c.l.b16 %v107
    %v199 = vunpack.c.h.b16 %v107
    %v200 = vunpack.c.l.b16 %v108
    %v201 = vunpack.c.h.b16 %v108
    %v202 = vunpack.c.l.b16 %v109
    %v203 = vunpack.c.h.b16 %v109
    %v204 = vunpack.c.l.b16 %v110
    %v205 = vunpack.c.h.b16 %v110
    %v206 = vunpack.c.l.b16 %v111
    %v207 = vunpack.c.h.b16 %v111
    %v208 = vunpack.c.l.b16 %v112
    %v209 = vunpack.c.h.b16 %v112
    %v210 = vunpack.c.l.b16 %v113
    %v211 = vunpack.c.h.b16 %v113
    %v212 = vunpack.c.l.b16 %v114
    %v213 = vunpack.c.h.b16 %v114
    %v214 = vunpack.c.l.b16 %v115
    %v215 = vunpack.c.h.b16 %v115
    %v216 = vunpack.c.l.b16 %v116
    %v217 = vunpack.c.h.b16 %v116
    %v218 = vunpack.c.l.b16 %v117
    %v219 = vunpack.c.h.b16 %v117
    %v220 = vunpack.c.l.b16 %v118
    %v221 = vunpack.c.h.b16 %v118
    %v222 = vunpack.c.l.b16 %v119
    %v223 = vunpack.c.h.b16 %v119
    %v224 = vunpack.c.l.b16 %v120
    %v225 = vunpack.c.h.b16 %v120
    %v226 = vunpack.c.l.b16 %v121
    %v227 = vunpack.c.h.b16 %v121
    %v228 = vunpack.c.l.b16 %v122
    %v229 = vunpack.c.h.b16 %v122
    %v230 = vunpack.c.l.b16 %v123
    %v231 = vunpack.c.h.b16 %v123
    %v232 = vunpack.c.l.b16 %v124
    %v233 = vunpack.c.h.b16 %v124
    %v234 = vunpack.c.l.b16 %v125
    %v235 = vunpack.c.h.b16 %v125
    %v236 = vunpack.c.l.b16 %v126
    %v237 = vunpack.c.h.b16 %v126
    %v238 = vunpack.c.l.b16 %v127
    %v239 = vunpack.c.h.b16 %v127
    %v240 = vunpack.c.l.b16 %v128
    %v241 = vunpack.c.h.b16 %v128
    %v242 = vunpack.c.l.b16 %v129
    %v243 = vunpack.c.h.b16 %v129
    %v244 = vunpack.c.l.b16 %v130
    %v245 = vunpack.c.h.b16 %v130
    %v246 = vunpack.c.l.b16 %v131
    %v247 = vunpack.c.h.b16 %v131
    %v248 = vunpack.c.l.b16 %v132
    %v249 = vunpack.c.h.b16 %v132
    %v250 = vunpack.c.l.b16 %v133
    %v251 = vunpack.c.h.b16 %v133
    %v252 = vpack.c.b16 %v192, %v188
    %v253 = vpack.c.b16 %v193, %v189
    %v254 = vpack.c.b16 %v194, %v190
    %v255 = vpack.c.b16 %v195, %v191
    %v256 = vpack.c.b16 %v200, %v196
    %v257 = vpack.c.b16 %v201, %v197
    %v258 = vpack.c.b16 %v202, %v198
    %v259 = vpack.c.b16 %v203, %v199
    %v260 = vpack.c.b16 %v208, %v204
    %v261 = vpack.c.b16 %v209, %v205
    %v262 = vpack.c.b16 %v210, %v206
    %v263 = vpack.c.b16 %v211, %v207
    %v264 = vpack.c.b16 %v216, %v212
    %v265 = vpack.c.b16 %v217, %v213
    %v266 = vpack.c.b16 %v218, %v214
    %v267 = vpack.c.b16 %v219, %v215
    %v268 = vpack.c.b16 %v224, %v220
    %v269 = vpack.c.b16 %v225, %v221
    %v270 = vpack.c.b16 %v226, %v222
    %v271 = vpack.c.b16 %v227, %v223
    %v272 = vpack.c.b16 %v232, %v228
    %v273 = vpack.c.b16 %v233, %v229
    %v274 = vpack.c.b16 %v234, %v230
    %v275 = vpack.c.b16 %v235, %v231
    %v276 = vpack.c.b16 %v240, %v236
    %v277 = vpack.c.b16 %v241, %v237
    %v278 = vpack.c.b16 %v242, %v238
    %v279 = vpack.c.b16 %v243, %v239
    %v280 = vpack.c.b16 %v248, %v244
    %v281 = vpack.c.b16 %v249, %v245
    %v282 = vpack.c.b16 %v250, %v246
    %v283 = vpack.c.b16 %v251, %v247
    %316 = vmatprep.subr.bf16.mxu0 %v253
    %317 = vmatpush1.bf16.msra.mxu0 %v252
    %318 = vmatprep.subr.bf16.mxu0 %v257
    %319 = vmatpush1.bf16.msra.mxu0 %v256
    %320 = vmatprep.subr.bf16.mxu0 %v261
    %321 = vmatpush1.bf16.msra.mxu0 %v260
    %322 = vmatprep.subr.bf16.mxu0 %v265
    %323 = vmatpush1.bf16.msra.mxu0 %v264
    %324 = vmatprep.subr.bf16.mxu0 %v269
    %325 = vmatpush1.bf16.msra.mxu0 %v268
    %326 = vmatprep.subr.bf16.mxu0 %v273
    %327 = vmatpush1.bf16.msra.mxu0 %v272
    %328 = vmatprep.subr.bf16.mxu0 %v277
    %329 = vmatpush1.bf16.msra.mxu0 %v276
    %330 = vmatprep.subr.bf16.mxu0 %v281
    %331 = vmatpush1.bf16.msra.mxu0 %v280
    %332 = vmatprep.subr.bf16.mxu0 0
    %333 = vmatpush1.bf16.msra.mxu0 0
    %334 = vmatprep.subr.bf16.mxu0 0
    %335 = vmatpush1.bf16.msra.mxu0 0
    %336 = vmatprep.subr.bf16.mxu0 0
    %337 = vmatpush1.bf16.msra.mxu0 0
    %338 = vmatprep.subr.bf16.mxu0 0
    %339 = vmatpush1.bf16.msra.mxu0 0
    %340 = vmatprep.subr.bf16.mxu0 0
    %341 = vmatpush1.bf16.msra.mxu0 0
    %342 = vmatprep.subr.bf16.mxu0 0
    %343 = vmatpush1.bf16.msra.mxu0 0
    %344 = vmatprep.subr.bf16.mxu0 0
    %345 = vmatpush1.bf16.msra.mxu0 0
    %346 = vmatprep.subr.bf16.mxu0 0
    %347 = vmatpush1.bf16.msra.mxu0 0
    %348 = vmatprep.mubr.bf16.mxu0 0
    %349 = vmatmul.mubr.bf16.gmra.mrb[0].mxu0 %v101
    %v350 = vpop.f32.mrb[0].mxu0
    %v351 = vadd.f32 %v139, %v350
    %v352 = vpop.f32.mrb[0].mxu0
    %v353 = vadd.f32 %v143, %v352
    %v354 = vpop.f32.mrb[0].mxu0
    %v355 = vpop.f32.mrb[0].mxu0
    %356 = vdwg.mxu0
    %357 = vmatprep.subr.bf16.mxu0 %v255
    %358 = vmatpush1.bf16.msra.mxu0 %v254
    %359 = vmatprep.subr.bf16.mxu0 %v259
    %360 = vmatpush1.bf16.msra.mxu0 %v258
    %361 = vmatprep.subr.bf16.mxu0 %v263
    %362 = vmatpush1.bf16.msra.mxu0 %v262
    %363 = vmatprep.subr.bf16.mxu0 %v267
    %364 = vmatpush1.bf16.msra.mxu0 %v266
    %365 = vmatprep.subr.bf16.mxu0 %v271
    %366 = vmatpush1.bf16.msra.mxu0 %v270
    %367 = vmatprep.subr.bf16.mxu0 %v275
    %368 = vmatpush1.bf16.msra.mxu0 %v274
    %369 = vmatprep.subr.bf16.mxu0 %v279
    %370 = vmatpush1.bf16.msra.mxu0 %v278
    %371 = vmatprep.subr.bf16.mxu0 %v283
    %372 = vmatpush1.bf16.msra.mxu0 %v282
    %373 = vmatprep.subr.bf16.mxu0 0
    %374 = vmatpush1.bf16.msra.mxu0 0
    %375 = vmatprep.subr.bf16.mxu0 0
    %376 = vmatpush1.bf16.msra.mxu0 0
    %377 = vmatprep.subr.bf16.mxu0 0
    %378 = vmatpush1.bf16.msra.mxu0 0
    %379 = vmatprep.subr.bf16.mxu0 0
    %380 = vmatpush1.bf16.msra.mxu0 0
    %381 = vmatprep.subr.bf16.mxu0 0
    %382 = vmatpush1.bf16.msra.mxu0 0
    %383 = vmatprep.subr.bf16.mxu0 0
    %384 = vmatpush1.bf16.msra.mxu0 0
    %385 = vmatprep.subr.bf16.mxu0 0
    %386 = vmatpush1.bf16.msra.mxu0 0
    %387 = vmatprep.subr.bf16.mxu0 0
    %388 = vmatpush1.bf16.msra.mxu0 0
    %389 = vmatprep.mubr.bf16.mxu0 0
    %390 = vmatmul.mubr.bf16.gmra.mrb[0].mxu0 %v101
    %v391 = vpop.f32.mrb[0].mxu0
    %v392 = vadd.f32 %v147, %v391
    %v393 = vpop.f32.mrb[0].mxu0
    %v394 = vadd.f32 %v151, %v393
    %v395 = vpop.f32.mrb[0].mxu0
    %v396 = vpop.f32.mrb[0].mxu0
    %397 = vdwg.mxu0
    %v398 = vmax.f32 %v351, 0.0
    %v399 = vmax.f32 %v353, 0.0
    %v400 = vmax.f32 %v392, 0.0
    %v401 = vmax.f32 %v394, 0.0
    %v402 = vpack.c.bf16 %v398, %v398
    %v403 = vpack.c.bf16 %v399, %v399
    %v404 = vpack.c.bf16 %v400, %v400
    %v405 = vpack.c.bf16 %v401, %v401
    %v406 = vld [vmem:[#allocation7] sm:$0xff]
    %v407 = vld [vmem:[#allocation7 + $0x8] sm:$0xff]
    %v408 = vld [vmem:[#allocation7 + $0x10] sm:$0xff]
    %v409 = vld [vmem:[#allocation7 + $0x18] sm:$0xff]
    %v410 = vld [vmem:[#allocation7 + $0x20] sm:$0xff]
    %v411 = vld [vmem:[#allocation7 + $0x28] sm:$0xff]
    %v412 = vld [vmem:[#allocation7 + $0x30] sm:$0xff]
    %v413 = vld [vmem:[#allocation7 + $0x38] sm:$0xff]
    %v414 = vld [vmem:[#allocation7 + $0x40] sm:$0xff]
    %v415 = vld [vmem:[#allocation7 + $0x48] sm:$0xff]
    %v416 = vld [vmem:[#allocation7 + $0x50] sm:$0xff]
    %v417 = vld [vmem:[#allocation7 + $0x58] sm:$0xff]
    %v418 = vld [vmem:[#allocation7 + $0x60] sm:$0xff]
    %v419 = vld [vmem:[#allocation7 + $0x68] sm:$0xff]
    %v420 = vld [vmem:[#allocation7 + $0x70] sm:$0xff]
    %v421 = vld [vmem:[#allocation7 + $0x78] sm:$0xff]
    %v422 = vld [vmem:[#allocation7 + $0x80] sm:$0xff]
    %v423 = vld [vmem:[#allocation7 + $0x88] sm:$0xff]
    %v424 = vld [vmem:[#allocation7 + $0x90] sm:$0xff]
    %v425 = vld [vmem:[#allocation7 + $0x98] sm:$0xff]
    %v426 = vld [vmem:[#allocation7 + $0xa0] sm:$0xff]
    %v427 = vld [vmem:[#allocation7 + $0xa8] sm:$0xff]
    %v428 = vld [vmem:[#allocation7 + $0xb0] sm:$0xff]
    %v429 = vld [vmem:[#allocation7 + $0xb8] sm:$0xff]
    %v430 = vld [vmem:[#allocation7 + $0xc0] sm:$0xff]
    %v431 = vld [vmem:[#allocation7 + $0xc8] sm:$0xff]
    %v432 = vld [vmem:[#allocation7 + $0xd0] sm:$0xff]
    %v433 = vld [vmem:[#allocation7 + $0xd8] sm:$0xff]
    %v434 = vld [vmem:[#allocation7 + $0xe0] sm:$0xff]
    %v435 = vld [vmem:[#allocation7 + $0xe8] sm:$0xff]
    %v436 = vld [vmem:[#allocation7 + $0xf0] sm:$0xff]
    %v437 = vld [vmem:[#allocation7 + $0xf8] sm:$0xff]
    %v438 = vld [vmem:[#allocation7 + $0x100] sm:$0xff]
    %v439 = vld [vmem:[#allocation7 + $0x108] sm:$0xff]
    %v440 = vld [vmem:[#allocation7 + $0x110] sm:$0xff]
    %v441 = vld [vmem:[#allocation7 + $0x118] sm:$0xff]
    %v442 = vld [vmem:[#allocation7 + $0x120] sm:$0xff]
    %v443 = vld [vmem:[#allocation7 + $0x128] sm:$0xff]
    %v444 = vld [vmem:[#allocation7 + $0x130] sm:$0xff]
    %v445 = vld [vmem:[#allocation7 + $0x138] sm:$0xff]
    %v446 = vld [vmem:[#allocation7 + $0x140] sm:$0xff]
    %v447 = vld [vmem:[#allocation7 + $0x148] sm:$0xff]
    %v448 = vld [vmem:[#allocation7 + $0x150] sm:$0xff]
    %v449 = vld [vmem:[#allocation7 + $0x158] sm:$0xff]
    %v450 = vld [vmem:[#allocation7 + $0x160] sm:$0xff]
    %v451 = vld [vmem:[#allocation7 + $0x168] sm:$0xff]
    %v452 = vld [vmem:[#allocation7 + $0x170] sm:$0xff]
    %v453 = vld [vmem:[#allocation7 + $0x178] sm:$0xff]
    %v454 = vld [vmem:[#allocation7 + $0x180] sm:$0xff]
    %v455 = vld [vmem:[#allocation7 + $0x188] sm:$0xff]
    %v456 = vld [vmem:[#allocation7 + $0x190] sm:$0xff]
    %v457 = vld [vmem:[#allocation7 + $0x198] sm:$0xff]
    %v458 = vld [vmem:[#allocation7 + $0x1a0] sm:$0xff]
    %v459 = vld [vmem:[#allocation7 + $0x1a8] sm:$0xff]
    %v460 = vld [vmem:[#allocation7 + $0x1b0] sm:$0xff]
    %v461 = vld [vmem:[#allocation7 + $0x1b8] sm:$0xff]
    %v462 = vld [vmem:[#allocation7 + $0x1c0] sm:$0xff]
    %v463 = vld [vmem:[#allocation7 + $0x1c8] sm:$0xff]
    %v464 = vld [vmem:[#allocation7 + $0x1d0] sm:$0xff]
    %v465 = vld [vmem:[#allocation7 + $0x1d8] sm:$0xff]
    %v466 = vld [vmem:[#allocation7 + $0x1e0] sm:$0xff]
    %v467 = vld [vmem:[#allocation7 + $0x1e8] sm:$0xff]
    %v468 = vld [vmem:[#allocation7 + $0x1f0] sm:$0xff]
    %v469 = vld [vmem:[#allocation7 + $0x1f8] sm:$0xff]
    %v470 = vld [vmem:[%s4] sm:$0x3]
    %v472 = vlaneseq
    %v473 = vshrl.u32 %v472, 7
    %v474 = vsub.s32 0, %v473
    %v475 = vrot.slane %v470, %v474
    %v476 = vlaneseq
    %v477 = vshrl.u32 %v476, 7
    %v478 = vsub.s32 1, %v477
    %v479 = vrot.slane %v470, %v478
    %v546 = vunpack.c.l.b16 %v406
    %v547 = vunpack.c.h.b16 %v406
    %v548 = vunpack.c.l.b16 %v407
    %v549 = vunpack.c.h.b16 %v407
    %v550 = vunpack.c.l.b16 %v408
    %v551 = vunpack.c.h.b16 %v408
    %v552 = vunpack.c.l.b16 %v409
    %v553 = vunpack.c.h.b16 %v409
    %v554 = vunpack.c.l.b16 %v410
    %v555 = vunpack.c.h.b16 %v410
    %v556 = vunpack.c.l.b16 %v411
    %v557 = vunpack.c.h.b16 %v411
    %v558 = vunpack.c.l.b16 %v412
    %v559 = vunpack.c.h.b16 %v412
    %v560 = vunpack.c.l.b16 %v413
    %v561 = vunpack.c.h.b16 %v413
    %v562 = vunpack.c.l.b16 %v414
    %v563 = vunpack.c.h.b16 %v414
    %v564 = vunpack.c.l.b16 %v415
    %v565 = vunpack.c.h.b16 %v415
    %v566 = vunpack.c.l.b16 %v416
    %v567 = vunpack.c.h.b16 %v416
    %v568 = vunpack.c.l.b16 %v417
    %v569 = vunpack.c.h.b16 %v417
    %v570 = vunpack.c.l.b16 %v418
    %v571 = vunpack.c.h.b16 %v418
    %v572 = vunpack.c.l.b16 %v419
    %v573 = vunpack.c.h.b16 %v419
    %v574 = vunpack.c.l.b16 %v420
    %v575 = vunpack.c.h.b16 %v420
    %v576 = vunpack.c.l.b16 %v421
    %v577 = vunpack.c.h.b16 %v421
    %v578 = vunpack.c.l.b16 %v422
    %v579 = vunpack.c.h.b16 %v422
    %v580 = vunpack.c.l.b16 %v423
    %v581 = vunpack.c.h.b16 %v423
    %v582 = vunpack.c.l.b16 %v424
    %v583 = vunpack.c.h.b16 %v424
    %v584 = vunpack.c.l.b16 %v425
    %v585 = vunpack.c.h.b16 %v425
    %v586 = vunpack.c.l.b16 %v426
    %v587 = vunpack.c.h.b16 %v426
    %v588 = vunpack.c.l.b16 %v427
    %v589 = vunpack.c.h.b16 %v427
    %v590 = vunpack.c.l.b16 %v428
    %v591 = vunpack.c.h.b16 %v428
    %v592 = vunpack.c.l.b16 %v429
    %v593 = vunpack.c.h.b16 %v429
    %v594 = vunpack.c.l.b16 %v430
    %v595 = vunpack.c.h.b16 %v430
    %v596 = vunpack.c.l.b16 %v431
    %v597 = vunpack.c.h.b16 %v431
    %v598 = vunpack.c.l.b16 %v432
    %v599 = vunpack.c.h.b16 %v432
    %v600 = vunpack.c.l.b16 %v433
    %v601 = vunpack.c.h.b16 %v433
    %v602 = vunpack.c.l.b16 %v434
    %v603 = vunpack.c.h.b16 %v434
    %v604 = vunpack.c.l.b16 %v435
    %v605 = vunpack.c.h.b16 %v435
    %v606 = vunpack.c.l.b16 %v436
    %v607 = vunpack.c.h.b16 %v436
    %v608 = vunpack.c.l.b16 %v437
    %v609 = vunpack.c.h.b16 %v437
    %v610 = vunpack.c.l.b16 %v438
    %v611 = vunpack.c.h.b16 %v438
    %v612 = vunpack.c.l.b16 %v439
    %v613 = vunpack.c.h.b16 %v439
    %v614 = vunpack.c.l.b16 %v440
    %v615 = vunpack.c.h.b16 %v440
    %v616 = vunpack.c.l.b16 %v441
    %v617 = vunpack.c.h.b16 %v441
    %v618 = vunpack.c.l.b16 %v442
    %v619 = vunpack.c.h.b16 %v442
    %v620 = vunpack.c.l.b16 %v443
    %v621 = vunpack.c.h.b16 %v443
    %v622 = vunpack.c.l.b16 %v444
    %v623 = vunpack.c.h.b16 %v444
    %v624 = vunpack.c.l.b16 %v445
    %v625 = vunpack.c.h.b16 %v445
    %v626 = vunpack.c.l.b16 %v446
    %v627 = vunpack.c.h.b16 %v446
    %v628 = vunpack.c.l.b16 %v447
    %v629 = vunpack.c.h.b16 %v447
    %v630 = vunpack.c.l.b16 %v448
    %v631 = vunpack.c.h.b16 %v448
    %v632 = vunpack.c.l.b16 %v449
    %v633 = vunpack.c.h.b16 %v449
    %v634 = vunpack.c.l.b16 %v450
    %v635 = vunpack.c.h.b16 %v450
    %v636 = vunpack.c.l.b16 %v451
    %v637 = vunpack.c.h.b16 %v451
    %v638 = vunpack.c.l.b16 %v452
    %v639 = vunpack.c.h.b16 %v452
    %v640 = vunpack.c.l.b16 %v453
    %v641 = vunpack.c.h.b16 %v453
    %v642 = vunpack.c.l.b16 %v454
    %v643 = vunpack.c.h.b16 %v454
    %v644 = vunpack.c.l.b16 %v455
    %v645 = vunpack.c.h.b16 %v455
    %v646 = vunpack.c.l.b16 %v456
    %v647 = vunpack.c.h.b16 %v456
    %v648 = vunpack.c.l.b16 %v457
    %v649 = vunpack.c.h.b16 %v457
    %v650 = vunpack.c.l.b16 %v458
    %v651 = vunpack.c.h.b16 %v458
    %v652 = vunpack.c.l.b16 %v459
    %v653 = vunpack.c.h.b16 %v459
    %v654 = vunpack.c.l.b16 %v460
    %v655 = vunpack.c.h.b16 %v460
    %v656 = vunpack.c.l.b16 %v461
    %v657 = vunpack.c.h.b16 %v461
    %v658 = vunpack.c.l.b16 %v462
    %v659 = vunpack.c.h.b16 %v462
    %v660 = vunpack.c.l.b16 %v463
    %v661 = vunpack.c.h.b16 %v463
    %v662 = vunpack.c.l.b16 %v464
    %v663 = vunpack.c.h.b16 %v464
    %v664 = vunpack.c.l.b16 %v465
    %v665 = vunpack.c.h.b16 %v465
    %v666 = vunpack.c.l.b16 %v466
    %v667 = vunpack.c.h.b16 %v466
    %v668 = vunpack.c.l.b16 %v467
    %v669 = vunpack.c.h.b16 %v467
    %v670 = vunpack.c.l.b16 %v468
    %v671 = vunpack.c.h.b16 %v468
    %v672 = vunpack.c.l.b16 %v469
    %v673 = vunpack.c.h.b16 %v469
    %v674 = vpack.c.b16 %v548, %v546
    %v675 = vpack.c.b16 %v549, %v547
    %v676 = vpack.c.b16 %v552, %v550
    %v677 = vpack.c.b16 %v553, %v551
    %v678 = vpack.c.b16 %v556, %v554
    %v679 = vpack.c.b16 %v557, %v555
    %v680 = vpack.c.b16 %v560, %v558
    %v681 = vpack.c.b16 %v561, %v559
    %v682 = vpack.c.b16 %v564, %v562
    %v683 = vpack.c.b16 %v565, %v563
    %v684 = vpack.c.b16 %v568, %v566
    %v685 = vpack.c.b16 %v569, %v567
    %v686 = vpack.c.b16 %v572, %v570
    %v687 = vpack.c.b16 %v573, %v571
    %v688 = vpack.c.b16 %v576, %v574
    %v689 = vpack.c.b16 %v577, %v575
    %v690 = vpack.c.b16 %v580, %v578
    %v691 = vpack.c.b16 %v581, %v579
    %v692 = vpack.c.b16 %v584, %v582
    %v693 = vpack.c.b16 %v585, %v583
    %v694 = vpack.c.b16 %v588, %v586
    %v695 = vpack.c.b16 %v589, %v587
    %v696 = vpack.c.b16 %v592, %v590
    %v697 = vpack.c.b16 %v593, %v591
    %v698 = vpack.c.b16 %v596, %v594
    %v699 = vpack.c.b16 %v597, %v595
    %v700 = vpack.c.b16 %v600, %v598
    %v701 = vpack.c.b16 %v601, %v599
    %v702 = vpack.c.b16 %v604, %v602
    %v703 = vpack.c.b16 %v605, %v603
    %v704 = vpack.c.b16 %v608, %v606
    %v705 = vpack.c.b16 %v609, %v607
    %v706 = vpack.c.b16 %v612, %v610
    %v707 = vpack.c.b16 %v613, %v611
    %v708 = vpack.c.b16 %v616, %v614
    %v709 = vpack.c.b16 %v617, %v615
    %v710 = vpack.c.b16 %v620, %v618
    %v711 = vpack.c.b16 %v621, %v619
    %v712 = vpack.c.b16 %v624, %v622
    %v713 = vpack.c.b16 %v625, %v623
    %v714 = vpack.c.b16 %v628, %v626
    %v715 = vpack.c.b16 %v629, %v627
    %v716 = vpack.c.b16 %v632, %v630
    %v717 = vpack.c.b16 %v633, %v631
    %v718 = vpack.c.b16 %v636, %v634
    %v719 = vpack.c.b16 %v637, %v635
    %v720 = vpack.c.b16 %v640, %v638
    %v721 = vpack.c.b16 %v641, %v639
    %v722 = vpack.c.b16 %v644, %v642
    %v723 = vpack.c.b16 %v645, %v643
    %v724 = vpack.c.b16 %v648, %v646
    %v725 = vpack.c.b16 %v649, %v647
    %v726 = vpack.c.b16 %v652, %v650
    %v727 = vpack.c.b16 %v653, %v651
    %v728 = vpack.c.b16 %v656, %v654
    %v729 = vpack.c.b16 %v657, %v655
    %v730 = vpack.c.b16 %v660, %v658
    %v731 = vpack.c.b16 %v661, %v659
    %v732 = vpack.c.b16 %v664, %v662
    %v733 = vpack.c.b16 %v665, %v663
    %v734 = vpack.c.b16 %v668, %v666
    %v735 = vpack.c.b16 %v669, %v667
    %v736 = vpack.c.b16 %v672, %v670
    %v737 = vpack.c.b16 %v673, %v671
    %802 = vmatprep.subr.bf16.mxu0 %v675
    %803 = vmatpush1.bf16.msra.mxu0 %v674
    %804 = vmatprep.subr.bf16.mxu0 %v677
    %805 = vmatpush1.bf16.msra.mxu0 %v676
    %806 = vmatprep.subr.bf16.mxu0 %v679
    %807 = vmatpush1.bf16.msra.mxu0 %v678
    %808 = vmatprep.subr.bf16.mxu0 %v681
    %809 = vmatpush1.bf16.msra.mxu0 %v680
    %810 = vmatprep.subr.bf16.mxu0 %v683
    %811 = vmatpush1.bf16.msra.mxu0 %v682
    %812 = vmatprep.subr.bf16.mxu0 %v685
    %813 = vmatpush1.bf16.msra.mxu0 %v684
    %814 = vmatprep.subr.bf16.mxu0 %v687
    %815 = vmatpush1.bf16.msra.mxu0 %v686
    %816 = vmatprep.subr.bf16.mxu0 %v689
    %817 = vmatpush1.bf16.msra.mxu0 %v688
    %818 = vmatprep.subr.bf16.mxu0 %v691
    %819 = vmatpush1.bf16.msra.mxu0 %v690
    %820 = vmatprep.subr.bf16.mxu0 %v693
    %821 = vmatpush1.bf16.msra.mxu0 %v692
    %822 = vmatprep.subr.bf16.mxu0 %v695
    %823 = vmatpush1.bf16.msra.mxu0 %v694
    %824 = vmatprep.subr.bf16.mxu0 %v697
    %825 = vmatpush1.bf16.msra.mxu0 %v696
    %826 = vmatprep.subr.bf16.mxu0 %v699
    %827 = vmatpush1.bf16.msra.mxu0 %v698
    %828 = vmatprep.subr.bf16.mxu0 %v701
    %829 = vmatpush1.bf16.msra.mxu0 %v700
    %830 = vmatprep.subr.bf16.mxu0 %v703
    %831 = vmatpush1.bf16.msra.mxu0 %v702
    %832 = vmatprep.subr.bf16.mxu0 %v705
    %833 = vmatpush1.bf16.msra.mxu0 %v704
    %834 = vmatprep.mubr.bf16.mxu0 %v403
    %835 = vmatmul.mubr.bf16.gmra.mrb[0].mxu0 %v402
    %v836 = vpop.f32.mrb[0].mxu0
    %v837 = vadd.f32 %v475, %v836
    %v838 = vpop.f32.mrb[0].mxu0
    %v839 = vadd.f32 %v479, %v838
    %v840 = vpop.f32.mrb[0].mxu0
    %v841 = vpop.f32.mrb[0].mxu0
    %842 = vdwg.mxu0
    %843 = vmatprep.subr.bf16.mxu0 %v707
    %844 = vmatpush1.bf16.msra.mxu0 %v706
    %845 = vmatprep.subr.bf16.mxu0 %v709
    %846 = vmatpush1.bf16.msra.mxu0 %v708
    %847 = vmatprep.subr.bf16.mxu0 %v711
    %848 = vmatpush1.bf16.msra.mxu0 %v710
    %849 = vmatprep.subr.bf16.mxu0 %v713
    %850 = vmatpush1.bf16.msra.mxu0 %v712
    %851 = vmatprep.subr.bf16.mxu0 %v715
    %852 = vmatpush1.bf16.msra.mxu0 %v714
    %853 = vmatprep.subr.bf16.mxu0 %v717
    %854 = vmatpush1.bf16.msra.mxu0 %v716
    %855 = vmatprep.subr.bf16.mxu0 %v719
    %856 = vmatpush1.bf16.msra.mxu0 %v718
    %857 = vmatprep.subr.bf16.mxu0 %v721
    %858 = vmatpush1.bf16.msra.mxu0 %v720
    %859 = vmatprep.subr.bf16.mxu0 %v723
    %860 = vmatpush1.bf16.msra.mxu0 %v722
    %861 = vmatprep.subr.bf16.mxu0 %v725
    %862 = vmatpush1.bf16.msra.mxu0 %v724
    %863 = vmatprep.subr.bf16.mxu0 %v727
    %864 = vmatpush1.bf16.msra.mxu0 %v726
    %865 = vmatprep.subr.bf16.mxu0 %v729
    %866 = vmatpush1.bf16.msra.mxu0 %v728
    %867 = vmatprep.subr.bf16.mxu0 %v731
    %868 = vmatpush1.bf16.msra.mxu0 %v730
    %869 = vmatprep.subr.bf16.mxu0 %v733
    %870 = vmatpush1.bf16.msra.mxu0 %v732
    %871 = vmatprep.subr.bf16.mxu0 %v735
    %872 = vmatpush1.bf16.msra.mxu0 %v734
    %873 = vmatprep.subr.bf16.mxu0 %v737
    %874 = vmatpush1.bf16.msra.mxu0 %v736
    %875 = vmatprep.mubr.bf16.mxu0 %v405
    %876 = vmatmul.mubr.bf16.gmra.mrb[0].mxu0 %v404
    %v877 = vpop.f32.mrb[0].mxu0
    %v878 = vadd.f32 %v837, %v877
    %v879 = vpop.f32.mrb[0].mxu0
    %v880 = vadd.f32 %v839, %v879
    %v881 = vpop.f32.mrb[0].mxu0
    %v882 = vpop.f32.mrb[0].mxu0
    %883 = vdwg.mxu0
    %v884 = vmax.f32 %v878, 0.0
    %v885 = vmax.f32 %v880, 0.0
    %v886 = vpack.c.bf16 %v884, %v884
    %v887 = vpack.c.bf16 %v885, %v885
    %v888 = vld [vmem:[#allocation8] sm:$0xf]
    %v889 = vld [vmem:[#allocation8 + $0x4] sm:$0xf]
    %v890 = vld [vmem:[#allocation8 + $0x8] sm:$0xf]
    %v891 = vld [vmem:[#allocation8 + $0xc] sm:$0xf]
    %v892 = vld [vmem:[#allocation8 + $0x10] sm:$0xf]
    %v893 = vld [vmem:[#allocation8 + $0x14] sm:$0xf]
    %v894 = vld [vmem:[#allocation8 + $0x18] sm:$0xf]
    %v895 = vld [vmem:[#allocation8 + $0x1c] sm:$0xf]
    %v896 = vld [vmem:[#allocation8 + $0x20] sm:$0xf]
    %v897 = vld [vmem:[#allocation8 + $0x24] sm:$0xf]
    %v898 = vld [vmem:[#allocation8 + $0x28] sm:$0xf]
    %v899 = vld [vmem:[#allocation8 + $0x2c] sm:$0xf]
    %v900 = vld [vmem:[#allocation8 + $0x30] sm:$0xf]
    %v901 = vld [vmem:[#allocation8 + $0x34] sm:$0xf]
    %v902 = vld [vmem:[#allocation8 + $0x38] sm:$0xf]
    %v903 = vld [vmem:[#allocation8 + $0x3c] sm:$0xf]
    %v904 = vld [vmem:[#allocation8 + $0x40] sm:$0xf]
    %v905 = vld [vmem:[#allocation8 + $0x44] sm:$0xf]
    %v906 = vld [vmem:[#allocation8 + $0x48] sm:$0xf]
    %v907 = vld [vmem:[#allocation8 + $0x4c] sm:$0xf]
    %v908 = vld [vmem:[#allocation8 + $0x50] sm:$0xf]
    %v909 = vld [vmem:[#allocation8 + $0x54] sm:$0xf]
    %v910 = vld [vmem:[#allocation8 + $0x58] sm:$0xf]
    %v911 = vld [vmem:[#allocation8 + $0x5c] sm:$0xf]
    %v912 = vld [vmem:[#allocation8 + $0x60] sm:$0xf]
    %v913 = vld [vmem:[#allocation8 + $0x64] sm:$0xf]
    %v914 = vld [vmem:[#allocation8 + $0x68] sm:$0xf]
    %v915 = vld [vmem:[#allocation8 + $0x6c] sm:$0xf]
    %v916 = vld [vmem:[#allocation8 + $0x70] sm:$0xf]
    %v917 = vld [vmem:[#allocation8 + $0x74] sm:$0xf]
    %v918 = vld [vmem:[#allocation8 + $0x78] sm:$0xf]
    %v919 = vld [vmem:[#allocation8 + $0x7c] sm:$0xf]
    %v920 = vld [vmem:[%s6] sm:$0x1]
    %v922 = vlaneseq
    %v923 = vshrl.u32 %v922, 7
    %v924 = vsub.s32 0, %v923
    %v925 = vrot.slane %v920, %v924
    %v959 = vunpack.c.l.b16 %v888
    %v960 = vunpack.c.l.b16 %v889
    %v961 = vunpack.c.l.b16 %v890
    %v962 = vunpack.c.l.b16 %v891
    %v963 = vunpack.c.l.b16 %v892
    %v964 = vunpack.c.l.b16 %v893
    %v965 = vunpack.c.l.b16 %v894
    %v966 = vunpack.c.l.b16 %v895
    %v967 = vunpack.c.l.b16 %v896
    %v968 = vunpack.c.l.b16 %v897
    %v969 = vunpack.c.l.b16 %v898
    %v970 = vunpack.c.l.b16 %v899
    %v971 = vunpack.c.l.b16 %v900
    %v972 = vunpack.c.l.b16 %v901
    %v973 = vunpack.c.l.b16 %v902
    %v974 = vunpack.c.l.b16 %v903
    %v975 = vunpack.c.l.b16 %v904
    %v976 = vunpack.c.l.b16 %v905
    %v977 = vunpack.c.l.b16 %v906
    %v978 = vunpack.c.l.b16 %v907
    %v979 = vunpack.c.l.b16 %v908
    %v980 = vunpack.c.l.b16 %v909
    %v981 = vunpack.c.l.b16 %v910
    %v982 = vunpack.c.l.b16 %v911
    %v983 = vunpack.c.l.b16 %v912
    %v984 = vunpack.c.l.b16 %v913
    %v985 = vunpack.c.l.b16 %v914
    %v986 = vunpack.c.l.b16 %v915
    %v987 = vunpack.c.l.b16 %v916
    %v988 = vunpack.c.l.b16 %v917
    %v989 = vunpack.c.l.b16 %v918
    %v990 = vunpack.c.l.b16 %v919
    %v991 = vpack.c.b16 %v960, %v959
    %v992 = vpack.c.b16 %v962, %v961
    %v993 = vpack.c.b16 %v964, %v963
    %v994 = vpack.c.b16 %v966, %v965
    %v995 = vpack.c.b16 %v968, %v967
    %v996 = vpack.c.b16 %v970, %v969
    %v997 = vpack.c.b16 %v972, %v971
    %v998 = vpack.c.b16 %v974, %v973
    %v999 = vpack.c.b16 %v976, %v975
    %v1000 = vpack.c.b16 %v978, %v977
    %v1001 = vpack.c.b16 %v980, %v979
    %v1002 = vpack.c.b16 %v982, %v981
    %v1003 = vpack.c.b16 %v984, %v983
    %v1004 = vpack.c.b16 %v986, %v985
    %v1005 = vpack.c.b16 %v988, %v987
    %v1006 = vpack.c.b16 %v990, %v989
    %1023 = vmatprep.subr.bf16.mxu0 0
    %1024 = vmatpush1.bf16.msra.mxu0 %v991
    %1025 = vmatprep.subr.bf16.mxu0 0
    %1026 = vmatpush1.bf16.msra.mxu0 %v992
    %1027 = vmatprep.subr.bf16.mxu0 0
    %1028 = vmatpush1.bf16.msra.mxu0 %v993
    %1029 = vmatprep.subr.bf16.mxu0 0
    %1030 = vmatpush1.bf16.msra.mxu0 %v994
    %1031 = vmatprep.subr.bf16.mxu0 0
    %1032 = vmatpush1.bf16.msra.mxu0 %v995
    %1033 = vmatprep.subr.bf16.mxu0 0
    %1034 = vmatpush1.bf16.msra.mxu0 %v996
    %1035 = vmatprep.subr.bf16.mxu0 0
    %1036 = vmatpush1.bf16.msra.mxu0 %v997
    %1037 = vmatprep.subr.bf16.mxu0 0
    %1038 = vmatpush1.bf16.msra.mxu0 %v998
    %1039 = vmatprep.subr.bf16.mxu0 0
    %1040 = vmatpush1.bf16.msra.mxu0 %v999
    %1041 = vmatprep.subr.bf16.mxu0 0
    %1042 = vmatpush1.bf16.msra.mxu0 %v1000
    %1043 = vmatprep.subr.bf16.mxu0 0
    %1044 = vmatpush1.bf16.msra.mxu0 %v1001
    %1045 = vmatprep.subr.bf16.mxu0 0
    %1046 = vmatpush1.bf16.msra.mxu0 %v1002
    %1047 = vmatprep.subr.bf16.mxu0 0
    %1048 = vmatpush1.bf16.msra.mxu0 %v1003
    %1049 = vmatprep.subr.bf16.mxu0 0
    %1050 = vmatpush1.bf16.msra.mxu0 %v1004
    %1051 = vmatprep.subr.bf16.mxu0 0
    %1052 = vmatpush1.bf16.msra.mxu0 %v1005
    %1053 = vmatprep.subr.bf16.mxu0 0
    %1054 = vmatpush1.bf16.msra.mxu0 %v1006
    %1055 = vmatprep.mubr.bf16.mxu0 %v887
    %1056 = vmatmul.mubr.bf16.gmra.mrb[0].mxu0 %v886
    %v1057 = vpop.f32.mrb[0].mxu0
    %v1058 = vadd.f32 %v925, %v1057
    %v1059 = vpop.f32.mrb[0].mxu0
    %v1060 = vpop.f32.mrb[0].mxu0
    %v1061 = vpop.f32.mrb[0].mxu0
    %1062 = vdwg.mxu0
    %v1063 = vmax.f32 %v1058, 0.0
    %v1064 = vpack.c.bf16 %v1063, %v1063
    %v1065 = vld [vmem:[#allocation10] sm:$0xf]
    %v1066 = vld [vmem:[#allocation10 + $0x4] sm:$0xf]
    %v1067 = vld [vmem:[#allocation10 + $0x8] sm:$0xf]
    %v1068 = vld [vmem:[#allocation10 + $0xc] sm:$0xf]
    %v1069 = vld [vmem:[#allocation10 + $0x10] sm:$0xf]
    %v1070 = vld [vmem:[#allocation10 + $0x14] sm:$0xf]
    %v1071 = vld [vmem:[#allocation10 + $0x18] sm:$0xf]
    %v1072 = vld [vmem:[#allocation10 + $0x1c] sm:$0xf]
    %v1073 = vld [vmem:[#allocation10 + $0x20] sm:$0xf]
    %v1074 = vld [vmem:[#allocation10 + $0x24] sm:$0xf]
    %v1075 = vld [vmem:[#allocation10 + $0x28] sm:$0xf]
    %v1076 = vld [vmem:[#allocation10 + $0x2c] sm:$0xf]
    %v1077 = vld [vmem:[#allocation10 + $0x30] sm:$0xf]
    %v1078 = vld [vmem:[#allocation10 + $0x34] sm:$0xf]
    %v1079 = vld [vmem:[#allocation10 + $0x38] sm:$0xf]
    %v1080 = vld [vmem:[#allocation10 + $0x3c] sm:$0xf]
    %v1081 = vld [vmem:[%s8] sm:$0x1]
    %v1083 = vlaneseq
    %v1084 = vshrl.u32 %v1083, 7
    %v1085 = vsub.s32 0, %v1084
    %v1086 = vrot.slane %v1081, %v1085
    %v1104 = vunpack.c.l.b16 %v1065
    %v1105 = vunpack.c.l.b16 %v1066
    %v1106 = vunpack.c.l.b16 %v1067
    %v1107 = vunpack.c.l.b16 %v1068
    %v1108 = vunpack.c.l.b16 %v1069
    %v1109 = vunpack.c.l.b16 %v1070
    %v1110 = vunpack.c.l.b16 %v1071
    %v1111 = vunpack.c.l.b16 %v1072
    %v1112 = vunpack.c.l.b16 %v1073
    %v1113 = vunpack.c.l.b16 %v1074
    %v1114 = vunpack.c.l.b16 %v1075
    %v1115 = vunpack.c.l.b16 %v1076
    %v1116 = vunpack.c.l.b16 %v1077
    %v1117 = vunpack.c.l.b16 %v1078
    %v1118 = vunpack.c.l.b16 %v1079
    %v1119 = vunpack.c.l.b16 %v1080
    %v1120 = vpack.c.b16 %v1105, %v1104
    %v1121 = vpack.c.b16 %v1107, %v1106
    %v1122 = vpack.c.b16 %v1109, %v1108
    %v1123 = vpack.c.b16 %v1111, %v1110
    %v1124 = vpack.c.b16 %v1113, %v1112
    %v1125 = vpack.c.b16 %v1115, %v1114
    %v1126 = vpack.c.b16 %v1117, %v1116
    %v1127 = vpack.c.b16 %v1119, %v1118
    %1136 = vmatprep.subr.bf16.mxu0 0
    %1137 = vmatpush1.bf16.msra.mxu0 %v1120
    %1138 = vmatprep.subr.bf16.mxu0 0
    %1139 = vmatpush1.bf16.msra.mxu0 %v1121
    %1140 = vmatprep.subr.bf16.mxu0 0
    %1141 = vmatpush1.bf16.msra.mxu0 %v1122
    %1142 = vmatprep.subr.bf16.mxu0 0
    %1143 = vmatpush1.bf16.msra.mxu0 %v1123
    %1144 = vmatprep.subr.bf16.mxu0 0
    %1145 = vmatpush1.bf16.msra.mxu0 %v1124
    %1146 = vmatprep.subr.bf16.mxu0 0
    %1147 = vmatpush1.bf16.msra.mxu0 %v1125
    %1148 = vmatprep.subr.bf16.mxu0 0
    %1149 = vmatpush1.bf16.msra.mxu0 %v1126
    %1150 = vmatprep.subr.bf16.mxu0 0
    %1151 = vmatpush1.bf16.msra.mxu0 %v1127
    %1152 = vmatprep.subr.bf16.mxu0 0
    %1153 = vmatpush1.bf16.msra.mxu0 0
    %1154 = vmatprep.subr.bf16.mxu0 0
    %1155 = vmatpush1.bf16.msra.mxu0 0
    %1156 = vmatprep.subr.bf16.mxu0 0
    %1157 = vmatpush1.bf16.msra.mxu0 0
    %1158 = vmatprep.subr.bf16.mxu0 0
    %1159 = vmatpush1.bf16.msra.mxu0 0
    %1160 = vmatprep.subr.bf16.mxu0 0
    %1161 = vmatpush1.bf16.msra.mxu0 0
    %1162 = vmatprep.subr.bf16.mxu0 0
    %1163 = vmatpush1.bf16.msra.mxu0 0
    %1164 = vmatprep.subr.bf16.mxu0 0
    %1165 = vmatpush1.bf16.msra.mxu0 0
    %1166 = vmatprep.subr.bf16.mxu0 0
    %1167 = vmatpush1.bf16.msra.mxu0 0
    %1168 = vmatprep.mubr.bf16.mxu0 0
    %1169 = vmatmul.mubr.bf16.gmra.mrb[0].mxu0 %v1064
    %v1170 = vpop.f32.mrb[0].mxu0
    %v1171 = vadd.f32 %v1086, %v1170
    %v1172 = vpop.f32.mrb[0].mxu0
    %v1173 = vpop.f32.mrb[0].mxu0
    %v1174 = vpop.f32.mrb[0].mxu0
    %1175 = vdwg.mxu0
    %v1176 = vpack.c.bf16 %v1171, %v1171
    %1177 = vst [vmem:[#allocation11] sm:$0xf] %v1176
    // Predicated region
    $region58: #{tpu_custom_call.1} parent=1 // pred_check
      _
    $region59: #{tpu_custom_call.1} parent=1 // pred_check_branch
      %1179 = sbr.rel (0) target = $region61
    $region60: #{tpu_custom_call.1} parent=1 // pred_region
      %s1181 = ssub.s32 64, 64
      %1182 = vsyncadd [#allocation4], %s1181
      %s1184 = sshll.u32 [#allocation11], 4
      %s1185 = int_to_ptr.vmem [resolvable:$true] %s1184
      %1187 = dma.vmem_to_hbm [thread:$0]  %s1185, 64, %s9, [#allocation4]
    $region61: #{tpu_custom_call.1} parent=1 // pred_fallthru
      _
    // Predicated region
    $region62: #{tpu_custom_call.1} parent=1 // pred_check
      _
    $region63: #{tpu_custom_call.1} parent=1 // pred_check_branch
      %1189 = sbr.rel (0) target = $region65
    $region64: #{tpu_custom_call.1} parent=1 // pred_region
      %1190 = dma.done [#allocation4], 64
    $region65: #{tpu_custom_call.1} parent=1 // pred_fallthru
      _
    %1191 = vsyncpa [#allocation3], 1
    %1192 = vsyncpa [#allocation6], 1
    %1193 = vsyncpa [#allocation9], 1
    %1194 = vsyncpa [#allocation4], 1

</llo_original>
